<compile_context>
chip_gen: v6e
topology: v6e:2x2x1
jax: 0.10.0
libtpu: 0.0.40
codegen_flags: <defaults>
</compile_context>

<pallas_src>
import jax
import jax.numpy as jnp
from jax.experimental import pallas as pl
from jax.experimental.pallas import tpu as pltpu

BN_EPS = 1e-5
LANE = 128


def _round_up(n: int, m: int) -> int:
    return ((n + m - 1) // m) * m


def _make_cross_kernel(num_cross_layers: int, batch: int):
    B = batch

    def cross_kernel(x_ref, w_ref, para_ref, out_ref):
        x0 = x_ref[...]                                # (B, Dp) f32, original input
        out = x0
        para = para_ref[0, 0]                          # scalar from SMEM
        inv_b = jnp.float32(1.0 / B)

        for i in range(num_cross_layers):              # L is small: static unroll
            # Single (1, Dp) row of w_i; VPU broadcasts it against (B, Dp).
            w_row = w_ref[i:i + 1, :]                  # (1, Dp)

            # s[b] = <out[b, :], w_i>  -- VPU multiply + XLU lane reduce.
            s = jnp.sum(out * w_row, axis=-1, keepdims=True)      # (B, 1)

            # Bias term b_i dropped: it is a per-feature constant and is
            # exactly cancelled by the affine=False BN's batch-mean subtraction.
            out = x0 * s + para * out                              # (B, Dp)

            # BatchNorm1d(affine=False), training-mode batch stats, fused
            # single pass: E[x], E[x^2] -> biased variance (clamped >= 0).
            sum_x = jnp.sum(out, axis=0, keepdims=True)            # (1, Dp)
            sum_x2 = jnp.sum(out * out, axis=0, keepdims=True)     # (1, Dp)
            mean = sum_x * inv_b
            var = jnp.maximum(sum_x2 * inv_b - mean * mean, 0.0)
            out = (out - mean) * jax.lax.rsqrt(var + BN_EPS)

        out_ref[...] = out

    return cross_kernel


def cross_forward(x, weight_w, weight_b, para):
    """x: (B, D) f32; weight_w/weight_b: (L, D) f32; para: scalar f32.

    weight_b is accepted for API parity with the PyTorch module but is not
    shipped to the device: an affine=False training-mode BatchNorm exactly
    cancels a per-feature constant added before it.
    """
    del weight_b  # exactly cancelled by the BN mean subtraction
    B, D = x.shape
    L = weight_w.shape[0]
    Dp = _round_up(max(D, LANE), LANE)       # lane-dense feature dimension
    pad = Dp - D

    x_p = jnp.pad(x.astype(jnp.float32), ((0, 0), (0, pad))) if pad else x.astype(jnp.float32)
    w_p = jnp.pad(weight_w.astype(jnp.float32), ((0, 0), (0, pad))) if pad else weight_w.astype(jnp.float32)
    para_arr = jnp.asarray(para, jnp.float32).reshape(1, 1)

    out_p = pl.pallas_call(
        _make_cross_kernel(L, B),
        out_shape=jax.ShapeDtypeStruct((B, Dp), jnp.float32),
        in_specs=[
            pl.BlockSpec(memory_space=pltpu.MemorySpace.VMEM),   # x (B, Dp)
            pl.BlockSpec(memory_space=pltpu.MemorySpace.VMEM),   # weight_w (L, Dp)
            pl.BlockSpec(memory_space=pltpu.MemorySpace.SMEM),   # para (1, 1)
        ],
        out_specs=pl.BlockSpec(memory_space=pltpu.MemorySpace.VMEM),
        # Reuse the padded-x HBM buffer for the output (x0 is fully read into
        # VMEM before out_ref is written, so the alias is safe).
        input_output_aliases={0: 0},
        compiler_params=pltpu.CompilerParams(vmem_limit_bytes=64 << 20),
    )(x_p, w_p, para_arr)

    return out_p[:, :D]


def cross_reference(x, weight_w, weight_b, para):
    """Pure-JAX reference mirroring the PyTorch forward (bias included)."""
    x0 = x
    out = x
    for i in range(weight_w.shape[0]):
        s = jnp.sum(out * weight_w[i][None, :], axis=-1, keepdims=True)
        xxTw = x0 * s
        out = xxTw + weight_b[i][None, :] + para * out
        mean = jnp.mean(out, axis=0, keepdims=True)
        var = jnp.mean((out - mean) ** 2, axis=0, keepdims=True)
        out = (out - mean) / jnp.sqrt(var + BN_EPS)
    return out


if __name__ == "__main__":
    # Small, deterministic setup consistent with the module:
    #   input_dim = 32, num_cross_layers = 3, batch = 8
    B, D, L = 8, 32, 3
    key = jax.random.PRNGKey(0)
    kx, kw, kb = jax.random.split(key, 3)

    x = jax.random.normal(kx, (B, D), dtype=jnp.float32)
    weight_w = jax.random.normal(kw, (L, D), dtype=jnp.float32)   # init.normal_
    weight_b = jax.random.normal(kb, (L, D), dtype=jnp.float32)   # init.normal_
    para = jnp.float32(0.5)                                       # para.data.fill_(0.5)

    out = cross_forward(x, weight_w, weight_b, para)
    out = jax.block_until_ready(out)

    ref = cross_reference(x, weight_w, weight_b, para)
    assert out.shape == (B, D)
    assert jnp.allclose(out, ref, atol=1e-4, rtol=1e-4), "mismatch vs reference"

    print("KERNEL_OK")
</pallas_src>

<mosaic_0001>
module attributes {stable_mosaic.version = 11 : i64} {
  func.func @cross_kernel(%arg0: memref<8x128xf32, #tpu.memory_space<vmem>>, %arg1: memref<3x128xf32, #tpu.memory_space<vmem>>, %arg2: memref<1x1xf32, #tpu.memory_space<smem>>, %arg3: memref<8x128xf32, #tpu.memory_space<vmem>>) attributes {dimension_semantics = [], scalar_prefetch = 0 : i64, scratch_operands = 0 : i64, tpu.core_type = #tpu.core_type<tc>} {
    %c0 = arith.constant 0 : index
    %c0_0 = arith.constant 0 : index
    %0 = vector.load %arg0[%c0, %c0_0] : memref<8x128xf32, #tpu.memory_space<vmem>>, vector<8x128xf32>
    %c0_1 = arith.constant 0 : index
    %c0_2 = arith.constant 0 : index
    %1 = memref.load %arg2[%c0_1, %c0_2] : memref<1x1xf32, #tpu.memory_space<smem>>
    %c0_3 = arith.constant 0 : index
    %c0_4 = arith.constant 0 : index
    %2 = vector.load %arg1[%c0_3, %c0_4] : memref<3x128xf32, #tpu.memory_space<vmem>>, vector<1x128xf32>
    %3 = vector.broadcast %2 : vector<1x128xf32> to vector<8x128xf32>
    %4 = arith.mulf %0, %3 : vector<8x128xf32>
    %cst = arith.constant dense<0.000000e+00> : vector<8xf32>
    %5 = vector.multi_reduction <add>, %4, %cst [1] : vector<8x128xf32> to vector<8xf32>
    %6 = vector.shape_cast %5 : vector<8xf32> to vector<8x1xf32>
    %7 = vector.broadcast %6 : vector<8x1xf32> to vector<8x128xf32>
    %8 = arith.mulf %0, %7 : vector<8x128xf32>
    %9 = vector.broadcast %1 : f32 to vector<8x128xf32>
    %10 = arith.mulf %9, %0 : vector<8x128xf32>
    %11 = arith.addf %8, %10 : vector<8x128xf32>
    %cst_5 = arith.constant dense<0.000000e+00> : vector<128xf32>
    %12 = vector.multi_reduction <add>, %11, %cst_5 [0] : vector<8x128xf32> to vector<128xf32>
    %13 = vector.shape_cast %12 : vector<128xf32> to vector<1x128xf32>
    %14 = arith.mulf %11, %11 : vector<8x128xf32>
    %cst_6 = arith.constant dense<0.000000e+00> : vector<128xf32>
    %15 = vector.multi_reduction <add>, %14, %cst_6 [0] : vector<8x128xf32> to vector<128xf32>
    %16 = vector.shape_cast %15 : vector<128xf32> to vector<1x128xf32>
    %cst_7 = arith.constant 1.250000e-01 : f32
    %17 = vector.broadcast %cst_7 : f32 to vector<1x128xf32>
    %18 = arith.mulf %13, %17 : vector<1x128xf32>
    %cst_8 = arith.constant 1.250000e-01 : f32
    %19 = vector.broadcast %cst_8 : f32 to vector<1x128xf32>
    %20 = arith.mulf %16, %19 : vector<1x128xf32>
    %21 = arith.mulf %18, %18 : vector<1x128xf32>
    %22 = arith.subf %20, %21 : vector<1x128xf32>
    %cst_9 = arith.constant 0.000000e+00 : f32
    %23 = vector.broadcast %cst_9 : f32 to vector<1x128xf32>
    %24 = arith.maximumf %22, %23 : vector<1x128xf32>
    %25 = vector.broadcast %18 : vector<1x128xf32> to vector<8x128xf32>
    %26 = arith.subf %11, %25 : vector<8x128xf32>
    %cst_10 = arith.constant 9.99999974E-6 : f32
    %27 = vector.broadcast %cst_10 : f32 to vector<1x128xf32>
    %28 = arith.addf %24, %27 : vector<1x128xf32>
    %29 = math.rsqrt %28 : vector<1x128xf32>
    %30 = vector.broadcast %29 : vector<1x128xf32> to vector<8x128xf32>
    %31 = arith.mulf %26, %30 : vector<8x128xf32>
    %c1 = arith.constant 1 : index
    %c0_11 = arith.constant 0 : index
    %32 = vector.load %arg1[%c1, %c0_11] : memref<3x128xf32, #tpu.memory_space<vmem>>, vector<1x128xf32>
    %33 = vector.broadcast %32 : vector<1x128xf32> to vector<8x128xf32>
    %34 = arith.mulf %31, %33 : vector<8x128xf32>
    %cst_12 = arith.constant dense<0.000000e+00> : vector<8xf32>
    %35 = vector.multi_reduction <add>, %34, %cst_12 [1] : vector<8x128xf32> to vector<8xf32>
    %36 = vector.shape_cast %35 : vector<8xf32> to vector<8x1xf32>
    %37 = vector.broadcast %36 : vector<8x1xf32> to vector<8x128xf32>
    %38 = arith.mulf %0, %37 : vector<8x128xf32>
    %39 = vector.broadcast %1 : f32 to vector<8x128xf32>
    %40 = arith.mulf %39, %31 : vector<8x128xf32>
    %41 = arith.addf %38, %40 : vector<8x128xf32>
    %cst_13 = arith.constant dense<0.000000e+00> : vector<128xf32>
    %42 = vector.multi_reduction <add>, %41, %cst_13 [0] : vector<8x128xf32> to vector<128xf32>
    %43 = vector.shape_cast %42 : vector<128xf32> to vector<1x128xf32>
    %44 = arith.mulf %41, %41 : vector<8x128xf32>
    %cst_14 = arith.constant dense<0.000000e+00> : vector<128xf32>
    %45 = vector.multi_reduction <add>, %44, %cst_14 [0] : vector<8x128xf32> to vector<128xf32>
    %46 = vector.shape_cast %45 : vector<128xf32> to vector<1x128xf32>
    %cst_15 = arith.constant 1.250000e-01 : f32
    %47 = vector.broadcast %cst_15 : f32 to vector<1x128xf32>
    %48 = arith.mulf %43, %47 : vector<1x128xf32>
    %cst_16 = arith.constant 1.250000e-01 : f32
    %49 = vector.broadcast %cst_16 : f32 to vector<1x128xf32>
    %50 = arith.mulf %46, %49 : vector<1x128xf32>
    %51 = arith.mulf %48, %48 : vector<1x128xf32>
    %52 = arith.subf %50, %51 : vector<1x128xf32>
    %cst_17 = arith.constant 0.000000e+00 : f32
    %53 = vector.broadcast %cst_17 : f32 to vector<1x128xf32>
    %54 = arith.maximumf %52, %53 : vector<1x128xf32>
    %55 = vector.broadcast %48 : vector<1x128xf32> to vector<8x128xf32>
    %56 = arith.subf %41, %55 : vector<8x128xf32>
    %cst_18 = arith.constant 9.99999974E-6 : f32
    %57 = vector.broadcast %cst_18 : f32 to vector<1x128xf32>
    %58 = arith.addf %54, %57 : vector<1x128xf32>
    %59 = math.rsqrt %58 : vector<1x128xf32>
    %60 = vector.broadcast %59 : vector<1x128xf32> to vector<8x128xf32>
    %61 = arith.mulf %56, %60 : vector<8x128xf32>
    %c2 = arith.constant 2 : index
    %c0_19 = arith.constant 0 : index
    %62 = vector.load %arg1[%c2, %c0_19] : memref<3x128xf32, #tpu.memory_space<vmem>>, vector<1x128xf32>
    %63 = vector.broadcast %62 : vector<1x128xf32> to vector<8x128xf32>
    %64 = arith.mulf %61, %63 : vector<8x128xf32>
    %cst_20 = arith.constant dense<0.000000e+00> : vector<8xf32>
    %65 = vector.multi_reduction <add>, %64, %cst_20 [1] : vector<8x128xf32> to vector<8xf32>
    %66 = vector.shape_cast %65 : vector<8xf32> to vector<8x1xf32>
    %67 = vector.broadcast %66 : vector<8x1xf32> to vector<8x128xf32>
    %68 = arith.mulf %0, %67 : vector<8x128xf32>
    %69 = vector.broadcast %1 : f32 to vector<8x128xf32>
    %70 = arith.mulf %69, %61 : vector<8x128xf32>
    %71 = arith.addf %68, %70 : vector<8x128xf32>
    %cst_21 = arith.constant dense<0.000000e+00> : vector<128xf32>
    %72 = vector.multi_reduction <add>, %71, %cst_21 [0] : vector<8x128xf32> to vector<128xf32>
    %73 = vector.shape_cast %72 : vector<128xf32> to vector<1x128xf32>
    %74 = arith.mulf %71, %71 : vector<8x128xf32>
    %cst_22 = arith.constant dense<0.000000e+00> : vector<128xf32>
    %75 = vector.multi_reduction <add>, %74, %cst_22 [0] : vector<8x128xf32> to vector<128xf32>
    %76 = vector.shape_cast %75 : vector<128xf32> to vector<1x128xf32>
    %cst_23 = arith.constant 1.250000e-01 : f32
    %77 = vector.broadcast %cst_23 : f32 to vector<1x128xf32>
    %78 = arith.mulf %73, %77 : vector<1x128xf32>
    %cst_24 = arith.constant 1.250000e-01 : f32
    %79 = vector.broadcast %cst_24 : f32 to vector<1x128xf32>
    %80 = arith.mulf %76, %79 : vector<1x128xf32>
    %81 = arith.mulf %78, %78 : vector<1x128xf32>
    %82 = arith.subf %80, %81 : vector<1x128xf32>
    %cst_25 = arith.constant 0.000000e+00 : f32
    %83 = vector.broadcast %cst_25 : f32 to vector<1x128xf32>
    %84 = arith.maximumf %82, %83 : vector<1x128xf32>
    %85 = vector.broadcast %78 : vector<1x128xf32> to vector<8x128xf32>
    %86 = arith.subf %71, %85 : vector<8x128xf32>
    %cst_26 = arith.constant 9.99999974E-6 : f32
    %87 = vector.broadcast %cst_26 : f32 to vector<1x128xf32>
    %88 = arith.addf %84, %87 : vector<1x128xf32>
    %89 = math.rsqrt %88 : vector<1x128xf32>
    %90 = vector.broadcast %89 : vector<1x128xf32> to vector<8x128xf32>
    %91 = arith.mulf %86, %90 : vector<8x128xf32>
    %c0_27 = arith.constant 0 : index
    %c0_28 = arith.constant 0 : index
    %92 = vector.load %arg3[%c0_27, %c0_28] : memref<8x128xf32, #tpu.memory_space<vmem>>, vector<8x128xf32>
    tpu.vector_store %arg3[%c0_27, %c0_28], %91 {strides = array<i32>} : memref<8x128xf32, #tpu.memory_space<vmem>>, vector<8x128xf32>,
    return
  }
}

</mosaic_0001>

<llo_original>
// kernel: tpu_custom_call.1
$region0: #{tpu_custom_call.1}
  #allocation0 [shape = 'u32[]', space=smem, size = 0x4, offset = 0x4, fixed_abs, tag = 'smem constant byte address 0x4 - core index']
  #allocation1 [shape = 'u32[144,128]{1,0:T(1,128)}', space=vmem, size = 0x12000, scoped, tag = 'internal scratch']
  #allocation2 [shape = 'f32[1,1]{1,0:T(1,128)S(6)}', space=smem, size = 0x200, scoped, tag = 'scoped memory for tpu_custom_call.1']
  %s0 = inlined_call_operand.hbm [shape: f32[8,128], index: 0, kind: input, shape index: {}, may-alias: {0,3}]
  %s1 = inlined_call_operand.vmem [shape: f32[3,128], index: 1, kind: input, shape index: {}]
  %s2 = inlined_call_operand.<no memory space> [shape: f32[1,1], index: 2, kind: input, shape index: {}]
  %s3 = inlined_call_operand.hbm [shape: f32[8,128], index: 3, kind: output, shape index: {}, may-alias: {0,3}]
  %s4 = sld [smem:[#allocation0]]
  $region26: #{tpu_custom_call.1} parent=0
    _
  %s6 = ssub.s32 1, %s4
  %s7 = scalar_select 0, %s6, %s4
  %8 = sst [smem:[#allocation2]] %s2
  $region1: #{tpu_custom_call.1} parent=0
    #allocation3 [shape = 'u8[4096]{0}', space=vmem, size = 0x1000, scoped, tag = 'input window, operand 0, single buffered']
    #allocation4 [shape = 's32[1]{0}', space=sflag, size = 0x4, scoped, tag = 'scoped memory for tpu_custom_call.1']
    #allocation5 [shape = 's32[1]{0}', space=sflag, size = 0x4, scoped, tag = 'scoped memory for tpu_custom_call.1']
    #allocation6 [shape = 'u8[4096]{0}', space=vmem, size = 0x1000, scoped, tag = 'output window, operand 0, single buffered']
    %9 = vsyncpa [#allocation4], 0
    %10 = vsyncpa [#allocation5], 0
    // Predicated region
    $region2: #{tpu_custom_call.1} parent=1 // pred_check
      _
    $region3: #{tpu_custom_call.1} parent=1 // pred_check_branch
      %12 = sbr.rel (0) target = $region5
    $region4: #{tpu_custom_call.1} parent=1 // pred_region
      %s14 = ssub.s32 128, 128
      %15 = vsyncadd [#allocation4], %s14
      %s17 = sshll.u32 [#allocation3], 4
      %s18 = int_to_ptr.vmem [resolvable:$true] %s17
      %20 = dma.hbm_to_vmem [thread:$0]  %s0, 128, %s18, [#allocation4]
    $region5: #{tpu_custom_call.1} parent=1 // pred_fallthru
      _
    // Predicated region
    $region6: #{tpu_custom_call.1} parent=1 // pred_check
      _
    $region7: #{tpu_custom_call.1} parent=1 // pred_check_branch
      %22 = sbr.rel (0) target = $region9
    $region8: #{tpu_custom_call.1} parent=1 // pred_region
      _
    $region9: #{tpu_custom_call.1} parent=1 // pred_fallthru
      _
    // Predicated region
    $region10: #{tpu_custom_call.1} parent=1 // pred_check
      _
    $region11: #{tpu_custom_call.1} parent=1 // pred_check_branch
      %24 = sbr.rel (0) target = $region13
    $region12: #{tpu_custom_call.1} parent=1 // pred_region
      _
    $region13: #{tpu_custom_call.1} parent=1 // pred_fallthru
      _
    // Predicated region
    $region14: #{tpu_custom_call.1} parent=1 // pred_check
      _
    $region15: #{tpu_custom_call.1} parent=1 // pred_check_branch
      %26 = sbr.rel (0) target = $region17
    $region16: #{tpu_custom_call.1} parent=1 // pred_region
      %27 = dma.done [#allocation4], 128
    $region17: #{tpu_custom_call.1} parent=1 // pred_fallthru
      _
    %v28 = vld [vmem:[#allocation3] sm:$0xff]
    %s29 = sld [smem:[#allocation2]]
    %v30 = vld [vmem:[%s1] sm:$0x1]
    %v31 = vlaneseq
    %v32 = vshrl.u32 %v31, 7
    %v33 = vsub.s32 0, %v32
    %v34 = vrot.slane %v30, %v33
    %v35 = vmul.f32 %v28, %v34
    %36 = vadd.xlane.f32.xlu0 %v35
    %v37 = vpop.xlane.xlu0 %36
    %v38 = vmul.f32 %v28, %v37
    %v39 = vstv %s29
    %v40 = vmul.f32 %v39, %v28
    %v41 = vadd.f32 %v38, %v40
    %v42 = vrot.slane %v41, 4
    %v43 = vadd.f32 %v41, %v42
    %v44 = vrot.slane %v43, 2
    %v45 = vadd.f32 %v43, %v44
    %v46 = vrot.slane %v45, 1
    %v47 = vadd.f32 %v45, %v46
    %v48 = vmul.f32 %v41, %v41
    %v49 = vrot.slane %v48, 4
    %v50 = vadd.f32 %v48, %v49
    %v51 = vrot.slane %v50, 2
    %v52 = vadd.f32 %v50, %v51
    %v53 = vrot.slane %v52, 1
    %v54 = vadd.f32 %v52, %v53
    %v55 = vmul.f32 %v47, 0.125
    %v56 = vmul.f32 %v54, 0.125
    %v57 = vmul.f32 %v55, %v55
    %v58 = vsub.f32 %v56, %v57
    %v59 = vmax.f32 %v58, 0.0
    %v60 = vsub.f32 %v41, %v55
    %v61 = vadd.f32 %v59, 1e-05
    %v62 = vrsqrt.pop %v61
    %v63 = vmul.f32 %v60, %v62
    %v64 = vld [vmem:[%s1 + $0x1] sm:$0x1]
    %v65 = vlaneseq
    %v66 = vshrl.u32 %v65, 7
    %v67 = vsub.s32 0, %v66
    %v68 = vrot.slane %v64, %v67
    %v69 = vmul.f32 %v63, %v68
    %70 = vadd.xlane.f32.xlu0 %v69
    %v71 = vpop.xlane.xlu0 %70
    %v72 = vmul.f32 %v28, %v71
    %v73 = vmul.f32 %v39, %v63
    %v74 = vadd.f32 %v72, %v73
    %v75 = vrot.slane %v74, 4
    %v76 = vadd.f32 %v74, %v75
    %v77 = vrot.slane %v76, 2
    %v78 = vadd.f32 %v76, %v77
    %v79 = vrot.slane %v78, 1
    %v80 = vadd.f32 %v78, %v79
    %v81 = vmul.f32 %v74, %v74
    %v82 = vrot.slane %v81, 4
    %v83 = vadd.f32 %v81, %v82
    %v84 = vrot.slane %v83, 2
    %v85 = vadd.f32 %v83, %v84
    %v86 = vrot.slane %v85, 1
    %v87 = vadd.f32 %v85, %v86
    %v88 = vmul.f32 %v80, 0.125
    %v89 = vmul.f32 %v87, 0.125
    %v90 = vmul.f32 %v88, %v88
    %v91 = vsub.f32 %v89, %v90
    %v92 = vmax.f32 %v91, 0.0
    %v93 = vsub.f32 %v74, %v88
    %v94 = vadd.f32 %v92, 1e-05
    %v95 = vrsqrt.pop %v94
    %v96 = vmul.f32 %v93, %v95
    %v97 = vld [vmem:[%s1 + $0x2] sm:$0x1]
    %v98 = vlaneseq
    %v99 = vshrl.u32 %v98, 7
    %v100 = vsub.s32 0, %v99
    %v101 = vrot.slane %v97, %v100
    %v102 = vmul.f32 %v96, %v101
    %103 = vadd.xlane.f32.xlu0 %v102
    %v104 = vpop.xlane.xlu0 %103
    %v105 = vmul.f32 %v28, %v104
    %v106 = vmul.f32 %v39, %v96
    %v107 = vadd.f32 %v105, %v106
    %v108 = vrot.slane %v107, 4
    %v109 = vadd.f32 %v107, %v108
    %v110 = vrot.slane %v109, 2
    %v111 = vadd.f32 %v109, %v110
    %v112 = vrot.slane %v111, 1
    %v113 = vadd.f32 %v111, %v112
    %v114 = vmul.f32 %v107, %v107
    %v115 = vrot.slane %v114, 4
    %v116 = vadd.f32 %v114, %v115
    %v117 = vrot.slane %v116, 2
    %v118 = vadd.f32 %v116, %v117
    %v119 = vrot.slane %v118, 1
    %v120 = vadd.f32 %v118, %v119
    %v121 = vmul.f32 %v113, 0.125
    %v122 = vmul.f32 %v120, 0.125
    %v123 = vmul.f32 %v121, %v121
    %v124 = vsub.f32 %v122, %v123
    %v125 = vmax.f32 %v124, 0.0
    %v126 = vsub.f32 %v107, %v121
    %v127 = vadd.f32 %v125, 1e-05
    %v128 = vrsqrt.pop %v127
    %v129 = vmul.f32 %v126, %v128
    %130 = vst [vmem:[#allocation6] sm:$0xff] %v129
    // Predicated region
    $region18: #{tpu_custom_call.1} parent=1 // pred_check
      _
    $region19: #{tpu_custom_call.1} parent=1 // pred_check_branch
      %132 = sbr.rel (0) target = $region21
    $region20: #{tpu_custom_call.1} parent=1 // pred_region
      %s134 = ssub.s32 128, 128
      %135 = vsyncadd [#allocation5], %s134
      %s137 = sshll.u32 [#allocation6], 4
      %s138 = int_to_ptr.vmem [resolvable:$true] %s137
      %140 = dma.vmem_to_hbm [thread:$0]  %s138, 128, %s3, [#allocation5]
    $region21: #{tpu_custom_call.1} parent=1 // pred_fallthru
      _
    // Predicated region
    $region22: #{tpu_custom_call.1} parent=1 // pred_check
      _
    $region23: #{tpu_custom_call.1} parent=1 // pred_check_branch
      %142 = sbr.rel (0) target = $region25
    $region24: #{tpu_custom_call.1} parent=1 // pred_region
      %143 = dma.done [#allocation5], 128
    $region25: #{tpu_custom_call.1} parent=1 // pred_fallthru
      _
    %144 = vsyncpa [#allocation4], 1
    %145 = vsyncpa [#allocation5], 1

</llo_original>
